<compile_context>
chip_gen: v5e
topology: v5e:2x2
jax: 0.10.0
libtpu: 0.0.40
codegen_flags: <defaults>
</compile_context>

<pallas_src>
import jax
import jax.numpy as jnp
import numpy as np
from jax.experimental import pallas as pl
from jax.experimental.pallas import tpu as pltpu

LANE = 128
_VMEM_LIMIT = 32 * 1024 * 1024  # per-step footprint is now small; safe on v5e/v6e/v7x


def _round_up(x, m):
    return ((x + m - 1) // m) * m


# ----------------------------- Pallas kernels ------------------------------

def conv1_bn_relu_kernel(x_ref, w_ref, s_ref, b_ref, o_ref):
    # x: (1,1,H,W,Cp)  w: (Cp,P)  s/b: (1,P)  o: (1,1,H+2,Wpa,P)
    _, _, h, w, cinp = x_ref.shape
    p = o_ref.shape[-1]
    x = x_ref[0, 0].reshape(h * w, cinp)
    y = jnp.dot(x, w_ref[...], preferred_element_type=jnp.float32)
    y = jnp.maximum(y * s_ref[...] + b_ref[...], 0.0)
    # Write the conv2-padded layout directly: zero halo + interior at (1.., 1..).
    o_ref[...] = jnp.zeros_like(o_ref)
    o_ref[0, 0, 1:1 + h, 1:1 + w, :] = y.reshape(h, w, p).astype(o_ref.dtype)


def conv2_conv3_fused_kernel(xp_ref, w2_ref, s2_ref, b2_ref,
                             w3_ref, s3_ref, b3_ref, res_ref,
                             o_ref, acc_ref):
    # xp : (1,1,H+2,Wpa,P)    padded conv1 plane at depth d + kd - 2 (clamped)
    # w2 : (1, 3P, 3P)        kd-slice of the effective 5x3x3 kernel
    #                         layout [kh*P+ci, kw*P+co]  (kh in K, kw in N)
    # w3 : (P, C3p)           conv3 weight; res/o: (1,1,H*W,C3p)
    # acc: (H, W, P) f32 VMEM accumulator across the kd grid axis
    h, w, p = acc_ref.shape
    _, _, hp, wpa, _ = xp_ref.shape
    d = pl.program_id(1)
    kd = pl.program_id(2)
    ndep = pl.num_programs(1)
    nkd = pl.num_programs(2)

    @pl.when(kd == 0)
    def _():
        acc_ref[...] = jnp.zeros_like(acc_ref)

    # Depth tap kd reads conv1 output at depth d + kd - 2 (zero padding outside).
    valid = jnp.logical_and(d + kd >= 2, d + kd < ndep + 2)

    @pl.when(valid)
    def _():
        plane = xp_ref[0, 0]                            # (H+2, Wpa, P)
        f = plane.reshape(hp * wpa, p)                  # free: wpa % 8 == 0
        hw_ = h * wpa
        # Pack the 3 kh taps into K (= 3P): slices are sublane-tile aligned.
        a = jnp.concatenate(
            [f[0:hw_], f[wpa:wpa + hw_], f[2 * wpa:2 * wpa + hw_]], axis=-1)
        # One MXU dot per kd: (H*Wpa, 3P) x (3P, 3P); kw taps live in N.
        y = jnp.dot(a, w2_ref[0], preferred_element_type=jnp.float32)
        y3 = y.reshape(h, wpa, 3 * p)
        # Combine the 3 kw taps with output-side shifts (only strided reads).
        contrib = (y3[:, 0:w, 0:p]
                   + y3[:, 1:1 + w, p:2 * p]
                   + y3[:, 2:2 + w, 2 * p:3 * p])       # (H, W, P)
        acc_ref[...] += contrib

    @pl.when(kd == nkd - 1)
    def _():
        # bn2 + relu + conv3 + bn3 + residual + relu (fused epilogue)
        hid = jnp.maximum(
            acc_ref[...].reshape(h * w, p) * s2_ref[...] + b2_ref[...], 0.0)
        y = jnp.dot(hid, w3_ref[...], preferred_element_type=jnp.float32)
        y = y * s3_ref[...] + b3_ref[...] + res_ref[0, 0]
        o_ref[0, 0] = jnp.maximum(y, 0.0).astype(o_ref.dtype)


# ----------------------------- Pallas wrappers ------------------------------

def pallas_conv1_bn_relu(x_cl, w1, s1, b1, hp, wpa):
    n, nd, h, w, cinp = x_cl.shape
    p = w1.shape[1]
    return pl.pallas_call(
        conv1_bn_relu_kernel,
        out_shape=jax.ShapeDtypeStruct((n, nd, hp, wpa, p), jnp.float32),
        grid=(n, nd),
        in_specs=[
            pl.BlockSpec((1, 1, h, w, cinp), lambda i, j: (i, j, 0, 0, 0)),
            pl.BlockSpec((cinp, p), lambda i, j: (0, 0)),     # resident weights
            pl.BlockSpec((1, p), lambda i, j: (0, 0)),
            pl.BlockSpec((1, p), lambda i, j: (0, 0)),
        ],
        out_specs=pl.BlockSpec((1, 1, hp, wpa, p), lambda i, j: (i, j, 0, 0, 0)),
        compiler_params=pltpu.CompilerParams(
            dimension_semantics=("parallel", "parallel"),
            vmem_limit_bytes=_VMEM_LIMIT),
    )(x_cl, w1, s1, b1)


def pallas_conv2_conv3_fused(xp, w2, s2, b2, w3, s3, b3, res, h, w):
    n, nd, hp, wpa, p = xp.shape
    hw = h * w
    c3p = w3.shape[1]

    def xp_map(ni, di, ki):
        return (ni, jnp.clip(di + ki - 2, 0, nd - 1), 0, 0, 0)

    return pl.pallas_call(
        conv2_conv3_fused_kernel,
        out_shape=jax.ShapeDtypeStruct((n, nd, hw, c3p), jnp.float32),
        grid=(n, nd, 5),
        in_specs=[
            pl.BlockSpec((1, 1, hp, wpa, p), xp_map),
            pl.BlockSpec((1, 3 * p, 3 * p), lambda ni, di, ki: (ki, 0, 0)),
            pl.BlockSpec((1, p), lambda ni, di, ki: (0, 0)),
            pl.BlockSpec((1, p), lambda ni, di, ki: (0, 0)),
            pl.BlockSpec((p, c3p), lambda ni, di, ki: (0, 0)),
            pl.BlockSpec((1, c3p), lambda ni, di, ki: (0, 0)),
            pl.BlockSpec((1, c3p), lambda ni, di, ki: (0, 0)),
            pl.BlockSpec((1, 1, hw, c3p), lambda ni, di, ki: (ni, di, 0, 0)),
        ],
        out_specs=pl.BlockSpec((1, 1, hw, c3p), lambda ni, di, ki: (ni, di, 0, 0)),
        scratch_shapes=[pltpu.VMEM((h, w, p), jnp.float32)],
        compiler_params=pltpu.CompilerParams(
            dimension_semantics=("parallel", "parallel", "arbitrary"),
            vmem_limit_bytes=_VMEM_LIMIT),
    )(xp, w2, s2, b2, w3, s3, b3, res)


# ------------------------------- Forward pass -------------------------------

def bottleneck_forward(x_ncdhw, kp, planes):
    n, cin, dd, hh, ww = x_ncdhw.shape
    assert cin == 4 * planes, "downsample=None requires inplanes == 4*planes"
    c3_pad = kp["w3"].shape[1]
    hp = hh + 2
    wpa = _round_up(ww + 2, 8)

    # NDHWC + zero-pad channels to the lane-dense conv3 width.  This single
    # (fused) transpose+pad feeds conv1 (zero weight rows for the pad) AND is
    # the residual — no separate residual-pad HBM pass.
    x_cl = jnp.pad(jnp.transpose(x_ncdhw, (0, 2, 3, 4, 1)),
                   ((0, 0), (0, 0), (0, 0), (0, 0), (0, c3_pad - cin)))

    # conv1 (1x1x1) + bn1 + relu, written directly into the H/W-padded,
    # 8-aligned layout the conv2 kernel consumes (no jnp.pad round trip).
    out1p = pallas_conv1_bn_relu(x_cl, kp["w1"], kp["s1"], kp["b1"], hp, wpa)

    res = x_cl.reshape(n, dd, hh * ww, c3_pad)          # free reshape

    # fused: (conv2+conv2_1+conv2_2) + bn2 + relu + conv3 + bn3 + residual + relu
    out = pallas_conv2_conv3_fused(out1p, kp["w2"], kp["s2"], kp["b2"],
                                   kp["w3"], kp["s3"], kp["b3"], res, hh, ww)

    out = out[..., :cin].reshape(n, dd, hh, ww, cin)
    return jnp.transpose(out, (0, 4, 1, 2, 3))          # back to NCDHW


# ------------------------------ Parameter init -------------------------------

def init_params(key, inplanes, planes):
    eps = 1e-5
    ks = jax.random.split(key, 17)

    def bn_fold(k0, k1, k2, k3, c):
        gamma = 1.0 + 0.1 * jax.random.normal(k0, (c,), jnp.float32)
        beta = 0.1 * jax.random.normal(k1, (c,), jnp.float32)
        mean = 0.1 * jax.random.normal(k2, (c,), jnp.float32)
        var = 1.0 + 0.1 * jnp.abs(jax.random.normal(k3, (c,), jnp.float32))
        scale = gamma / jnp.sqrt(var + eps)
        bias = beta - mean * scale
        return scale, bias

    # PyTorch conv weights are OIDHW
    w1 = 0.1 * jax.random.normal(ks[0], (planes, inplanes, 1, 1, 1), jnp.float32)
    w2 = 0.1 * jax.random.normal(ks[1], (planes, planes, 3, 3, 3), jnp.float32)
    w2_1 = 0.1 * jax.random.normal(ks[2], (planes, planes, 5, 3, 3), jnp.float32)
    w2_2 = 0.1 * jax.random.normal(ks[3], (planes, planes, 1, 3, 3), jnp.float32)
    w3 = 0.1 * jax.random.normal(ks[4], (planes * 4, planes, 1, 1, 1), jnp.float32)

    s1, b1 = bn_fold(ks[5], ks[6], ks[7], ks[8], planes)
    s2, b2 = bn_fold(ks[9], ks[10], ks[11], ks[12], planes)
    s3, b3 = bn_fold(ks[13], ks[14], ks[15], ks[16], planes * 4)

    return dict(w1_raw=w1, w2_raw=w2, w2_1_raw=w2_1, w2_2_raw=w2_2, w3_raw=w3,
                s1=s1, b1=b1, s2=s2, b2=b2, s3=s3, b3=b3)


def prep_kernel_params(p, inplanes, planes):
    """Build lane-padded, kernel-friendly weights/scales (done once, offline)."""
    p_pad = _round_up(planes, LANE)
    c3 = 4 * planes
    c3_pad = _round_up(c3, LANE)
    assert inplanes == c3

    # conv1: (planes, inplanes,1,1,1) -> (C3_pad, P_pad); padded rows are zero
    # so the channel-padded input contributes nothing.
    w1 = jnp.transpose(p["w1_raw"][:, :, 0, 0, 0], (1, 0))
    w1 = jnp.pad(w1, ((0, c3_pad - inplanes), (0, p_pad - planes)))

    # effective 5x3x3 kernel = conv2_1 + (conv2 centered) + (conv2_2 centered)
    w2_t = jnp.transpose(p["w2_raw"], (2, 3, 4, 1, 0))      # (3,3,3,Ci,Co)
    w21_t = jnp.transpose(p["w2_1_raw"], (2, 3, 4, 1, 0))   # (5,3,3,Ci,Co)
    w22_t = jnp.transpose(p["w2_2_raw"], (2, 3, 4, 1, 0))   # (1,3,3,Ci,Co)
    w_eff = w21_t.at[1:4].add(w2_t).at[2].add(w22_t[0])     # (5,3,3,Ci,Co)
    w_eff = jnp.pad(w_eff, ((0, 0), (0, 0), (0, 0),
                            (0, p_pad - planes), (0, p_pad - planes)))
    # block layout [kd, kh*P+ci, kw*P+co]: kh packs into K, kw into N.
    w2 = jnp.transpose(w_eff, (0, 1, 3, 2, 4)).reshape(5, 3 * p_pad, 3 * p_pad)

    # conv3: (4p, p, 1,1,1) -> (P_pad, C3_pad)
    w3 = jnp.transpose(p["w3_raw"][:, :, 0, 0, 0], (1, 0))
    w3 = jnp.pad(w3, ((0, p_pad - planes), (0, c3_pad - c3)))

    def padvec(v, ncols):
        return jnp.pad(v, (0, ncols - v.shape[0])).reshape(1, ncols)

    return dict(
        w1=w1, s1=padvec(p["s1"], p_pad), b1=padvec(p["b1"], p_pad),
        w2=w2, s2=padvec(p["s2"], p_pad), b2=padvec(p["b2"], p_pad),
        w3=w3, s3=padvec(p["s3"], c3_pad), b3=padvec(p["b3"], c3_pad),
    )


# ------------------------------ Pure-JAX reference ---------------------------

def _conv3d_ref(x_ndhwc, w_oidhw, padding):
    w = jnp.transpose(w_oidhw, (2, 3, 4, 1, 0))              # DHWIO
    return jax.lax.conv_general_dilated(
        x_ndhwc, w, window_strides=(1, 1, 1), padding=padding,
        dimension_numbers=("NDHWC", "DHWIO", "NDHWC"),
        precision=jax.lax.Precision.HIGHEST)


def ref_forward(x_ncdhw, p):
    xt = jnp.transpose(x_ncdhw, (0, 2, 3, 4, 1))
    out = _conv3d_ref(xt, p["w1_raw"], ((0, 0), (0, 0), (0, 0)))
    out = jnp.maximum(out * p["s1"] + p["b1"], 0.0)
    o0 = _conv3d_ref(out, p["w2_raw"], ((1, 1), (1, 1), (1, 1)))
    o1 = _conv3d_ref(out, p["w2_1_raw"], ((2, 2), (1, 1), (1, 1)))
    o2 = _conv3d_ref(out, p["w2_2_raw"], ((0, 0), (1, 1), (1, 1)))
    out = jnp.maximum((o0 + o1 + o2) * p["s2"] + p["b2"], 0.0)
    out = _conv3d_ref(out, p["w3_raw"], ((0, 0), (0, 0), (0, 0)))
    out = out * p["s3"] + p["b3"] + xt
    return jnp.transpose(jnp.maximum(out, 0.0), (0, 4, 1, 2, 3))


# ------------------------------------ Main -----------------------------------

if __name__ == "__main__":
    key = jax.random.PRNGKey(0)
    k_x, k_p = jax.random.split(key)

    # inplanes must equal planes * expansion(4) since downsample=None
    N, planes = 2, 4
    inplanes = 4 * planes
    D, H, W = 4, 8, 8

    raw_params = init_params(k_p, inplanes, planes)
    kernel_params = prep_kernel_params(raw_params, inplanes, planes)
    x = jax.random.normal(k_x, (N, inplanes, D, H, W), jnp.float32)

    out = bottleneck_forward(x, kernel_params, planes)
    out = jax.block_until_ready(out)

    ref = jax.block_until_ready(ref_forward(x, raw_params))

    assert out.shape == (N, inplanes, D, H, W), out.shape
    np.testing.assert_allclose(np.asarray(out), np.asarray(ref),
                               rtol=1e-3, atol=1e-3)
    print("KERNEL_OK")
</pallas_src>

<mosaic_0001>
module attributes {stable_mosaic.version = 11 : i64} {
  func.func @conv1_bn_relu_kernel(%arg0: i32, %arg1: i32, %arg2: memref<1x1x8x8x128xf32, #tpu.memory_space<vmem>>, %arg3: memref<128x128xf32, #tpu.memory_space<vmem>>, %arg4: memref<1x128xf32, #tpu.memory_space<vmem>>, %arg5: memref<1x128xf32, #tpu.memory_space<vmem>>, %arg6: memref<1x1x10x16x128xf32, #tpu.memory_space<vmem>>) attributes {dimension_semantics = [#tpu.dimension_semantics<parallel>, #tpu.dimension_semantics<parallel>], iteration_bounds = array<i64: 2, 4>, scalar_prefetch = 0 : i64, scratch_operands = 0 : i64, tpu.core_type = #tpu.core_type<tc>, window_params = [{transform_indices = @transform_0, window_bounds = array<i64: 1, 1, 8, 8, 128>}, {pipeline_mode = #tpu.pipeline_mode<synchronous>, transform_indices = @transform_1, window_bounds = array<i64: 128, 128>}, {pipeline_mode = #tpu.pipeline_mode<synchronous>, transform_indices = @transform_2, window_bounds = array<i64: 1, 128>}, {pipeline_mode = #tpu.pipeline_mode<synchronous>, transform_indices = @transform_3, window_bounds = array<i64: 1, 128>}, {transform_indices = @transform_4, window_bounds = array<i64: 1, 1, 10, 16, 128>}]} {
    %c0 = arith.constant 0 : index
    %c0_0 = arith.constant 0 : index
    %c0_1 = arith.constant 0 : index
    %c0_2 = arith.constant 0 : index
    %c0_3 = arith.constant 0 : index
    %0 = vector.load %arg2[%c0, %c0_0, %c0_1, %c0_2, %c0_3] : memref<1x1x8x8x128xf32, #tpu.memory_space<vmem>>, vector<1x1x8x8x128xf32>
    %1 = vector.shape_cast %0 : vector<1x1x8x8x128xf32> to vector<8x8x128xf32>
    %2 = vector.shape_cast %1 : vector<8x8x128xf32> to vector<64x128xf32>
    %c0_4 = arith.constant 0 : index
    %c0_5 = arith.constant 0 : index
    %3 = vector.load %arg3[%c0_4, %c0_5] : memref<128x128xf32, #tpu.memory_space<vmem>>, vector<128x128xf32>
    %cst = arith.constant dense<0.000000e+00> : vector<64x128xf32>
    %4 = tpu.matmul %2, %3, %cst {dimension_numbers = #tpu.dot_dimension_numbers<[1], [0], [0], [1], [0, 0, 1, 1], [], []>} : vector<64x128xf32>, vector<128x128xf32>, vector<64x128xf32> -> vector<64x128xf32>
    %c0_6 = arith.constant 0 : index
    %c0_7 = arith.constant 0 : index
    %5 = vector.load %arg4[%c0_6, %c0_7] : memref<1x128xf32, #tpu.memory_space<vmem>>, vector<1x128xf32>
    %6 = vector.broadcast %5 : vector<1x128xf32> to vector<64x128xf32>
    %7 = arith.mulf %4, %6 : vector<64x128xf32>
    %c0_8 = arith.constant 0 : index
    %c0_9 = arith.constant 0 : index
    %8 = vector.load %arg5[%c0_8, %c0_9] : memref<1x128xf32, #tpu.memory_space<vmem>>, vector<1x128xf32>
    %9 = vector.broadcast %8 : vector<1x128xf32> to vector<64x128xf32>
    %10 = arith.addf %7, %9 : vector<64x128xf32>
    %cst_10 = arith.constant 0.000000e+00 : f32
    %11 = vector.broadcast %cst_10 : f32 to vector<64x128xf32>
    %12 = arith.maximumf %10, %11 : vector<64x128xf32>
    %cst_11 = arith.constant 0.000000e+00 : f32
    %13 = vector.broadcast %cst_11 : f32 to vector<1x1x10x16x128xf32>
    %c0_12 = arith.constant 0 : index
    %c0_13 = arith.constant 0 : index
    %c0_14 = arith.constant 0 : index
    %c0_15 = arith.constant 0 : index
    %c0_16 = arith.constant 0 : index
    %14 = vector.load %arg6[%c0_12, %c0_13, %c0_14, %c0_15, %c0_16] : memref<1x1x10x16x128xf32, #tpu.memory_space<vmem>>, vector<1x1x10x16x128xf32>
    tpu.vector_store %arg6[%c0_12, %c0_13, %c0_14, %c0_15, %c0_16], %13 {strides = array<i32>} : memref<1x1x10x16x128xf32, #tpu.memory_space<vmem>>, vector<1x1x10x16x128xf32>,
    %15 = vector.shape_cast %12 : vector<64x128xf32> to vector<8x8x128xf32>
    %c0_17 = arith.constant 0 : index
    %c0_18 = arith.constant 0 : index
    %c1 = arith.constant 1 : index
    %c1_19 = arith.constant 1 : index
    %c0_20 = arith.constant 0 : index
    %16 = vector.load %arg6[%c0_17, %c0_18, %c1, %c1_19, %c0_20] : memref<1x1x10x16x128xf32, #tpu.memory_space<vmem>>, vector<1x1x8x8x128xf32>
    %17 = vector.shape_cast %16 : vector<1x1x8x8x128xf32> to vector<8x8x128xf32>
    %18 = vector.shape_cast %15 : vector<8x8x128xf32> to vector<1x1x8x8x128xf32>
    tpu.vector_store %arg6[%c0_17, %c0_18, %c1, %c1_19, %c0_20], %18 {strides = array<i32>} : memref<1x1x10x16x128xf32, #tpu.memory_space<vmem>>, vector<1x1x8x8x128xf32>,
    return
  }
  func.func @transform_0(%arg0: i32, %arg1: i32) -> (i32, i32, i32, i32, i32) {
    %c0_i32 = arith.constant 0 : i32
    %c0_i32_0 = arith.constant 0 : i32
    %c0_i32_1 = arith.constant 0 : i32
    %c0_i32_2 = arith.constant 0 : i32
    return %arg0, %arg1, %c0_i32, %c0_i32_0, %c0_i32_1 : i32, i32, i32, i32, i32
  }
  func.func @transform_1(%arg0: i32, %arg1: i32) -> (i32, i32) {
    %c0_i32 = arith.constant 0 : i32
    %c0_i32_0 = arith.constant 0 : i32
    %c0_i32_1 = arith.constant 0 : i32
    return %c0_i32, %c0_i32_0 : i32, i32
  }
  func.func @transform_2(%arg0: i32, %arg1: i32) -> (i32, i32) {
    %c0_i32 = arith.constant 0 : i32
    %c0_i32_0 = arith.constant 0 : i32
    %c0_i32_1 = arith.constant 0 : i32
    return %c0_i32, %c0_i32_0 : i32, i32
  }
  func.func @transform_3(%arg0: i32, %arg1: i32) -> (i32, i32) {
    %c0_i32 = arith.constant 0 : i32
    %c0_i32_0 = arith.constant 0 : i32
    %c0_i32_1 = arith.constant 0 : i32
    return %c0_i32, %c0_i32_0 : i32, i32
  }
  func.func @transform_4(%arg0: i32, %arg1: i32) -> (i32, i32, i32, i32, i32) {
    %c0_i32 = arith.constant 0 : i32
    %c0_i32_0 = arith.constant 0 : i32
    %c0_i32_1 = arith.constant 0 : i32
    %c0_i32_2 = arith.constant 0 : i32
    return %arg0, %arg1, %c0_i32, %c0_i32_0, %c0_i32_1 : i32, i32, i32, i32, i32
  }
}

</mosaic_0001>

<llo_original>
// kernel: tpu_custom_call.1
$region0: #{tpu_custom_call.1}
  #allocation0 [shape = 'u32[]', space=smem, size = 0x4, offset = 0x4, fixed_abs, tag = 'smem constant byte address 0x4 - core index']
  #allocation1 [shape = 'u32[72,128]{1,0:T(1,128)}', space=vmem, size = 0x9000, scoped, tag = 'internal scratch']
  %s0 = inlined_call_operand.hbm [shape: f32[2,4,8,8,128], index: 0, kind: input, shape index: {}]
  %s1 = inlined_call_operand.hbm [shape: f32[128,128], index: 1, kind: input, shape index: {}]
  %s2 = inlined_call_operand.vmem [shape: f32[1,128], index: 2, kind: input, shape index: {}]
  %s3 = inlined_call_operand.vmem [shape: f32[1,128], index: 3, kind: input, shape index: {}]
  %s4 = inlined_call_operand.hbm [shape: f32[2,4,10,16,128], index: 4, kind: output, shape index: {}]
  %s5 = sld [smem:[#allocation0]]
  $region57: #{tpu_custom_call.1} parent=0
    _
  %s7 = ssub.s32 1, %s5
  %s8 = scalar_select 0, %s7, %s5
  $region1: #{tpu_custom_call.1} parent=0
    #allocation2 [shape = 'u8[65536]{0}', space=vmem, size = 0x10000, scoped, tag = 'input window, operand 0']
    #allocation3 [shape = 's32[2]{0}', space=sflag, size = 0x8, scoped, tag = 'scoped memory for tpu_custom_call.1']
    #allocation4 [shape = 's32[2]{0}', space=sflag, size = 0x8, scoped, tag = 'scoped memory for tpu_custom_call.1']
    #allocation5 [shape = 'u8[65536]{0}', space=vmem, size = 0x10000, scoped, tag = 'input window, operand 1, single buffered']
    #allocation6 [shape = 's32[1]{0}', space=sflag, size = 0x4, scoped, tag = 'scoped memory for tpu_custom_call.1']
    #allocation7 [shape = 'u8[163840]{0}', space=vmem, size = 0x28000, scoped, tag = 'output window, operand 0']
    %9 = vsyncpa [#allocation3], 0
    %s10 = scalar_lea.sflag [#allocation3], 1
    %11 = vsyncpa %s10, 0
    %12 = vsyncpa [#allocation6], 0
    %13 = vsyncpa [#allocation4], 0
    %s14 = scalar_lea.sflag [#allocation4], 1
    %15 = vsyncpa %s14, 0
    loop: start=0, step=1, limit=10
    $region2: #{tpu_custom_call.1} parent=1 // loop_pre_header
      _
    $region3: #{tpu_custom_call.1} parent=1 // loop_header
      %s17 = sphi 0, %s21
      %p18 = scmp.ge.s32.totalorder %s17, 10
      %s24 = sphi 0, %s36
      %s25 = sphi 0, %s32
      %s26 = sphi 0, %s24
      %s27 = sphi 0, %s25
      %s28 = sphi 0, %s26
      %s29 = sphi 0, %s27
      %s41 = sphi 0, %s43
      %s44 = sphi 0, %s41
      %s45 = sphi 0, %s44
      %s61 = sphi 0, %s45
      %s65 = sphi 0, %s65
      %s67 = sphi 0, %s65
      %s68 = sphi 0, %s67
      %s82 = sphi 0, %s68
      %s86 = sphi 0, %s86
      %s88 = sphi 0, %s86
      %s89 = sphi 0, %s88
      %s103 = sphi 0, %s89
      %s107 = sphi 0, %s107
      %s109 = sphi 0, %s107
      %s110 = sphi 0, %s109
      %s124 = sphi 0, %s110
      %s132 = sphi 0, %s134
      %s135 = sphi 0, %s132
      %s136 = sphi 0, %s135
      %s152 = sphi 0, %s136
    $region4: #{tpu_custom_call.1} parent=1 // loop_header_branch
      %20 = sbr.rel (%p18) target = $region8
    $region5: #{tpu_custom_call.1} parent=1 // loop_body
      %s22 = ssub.s32 %s17, 1
      %s23 = ssub.s32 %s17, 2
      %s30 = sadd.s32 1, %s25
      %p31 = scmp.ge.s32.totalorder %s30, 4
      %s32 = scalar_select %p31, 0, %s30
      %s33 = sadd.s32 1, %s24
      %s34 = scalar_select %p31, %s33, %s24
      %p35 = scmp.ge.s32.totalorder %s34, 2
      %s36 = scalar_select %p35, 0, %s34
      %s37 = ssub.s32 %s24, %s36
      %s38 = ssub.s32 %s25, %s32
      %s39 = sor.u32 %s37, %s38
      %p40 = scmp.eq.s32.totalorder %s39, 0
      %s42 = sadd.s32 %s41, 1
      %s43 = scalar_select %p40, %s41, %s42
      %p46 = pneg %p40
      %p47 = scmp.eq.s32.totalorder %s17, 7
      %p48 = por %p46, %p47
      %p49 = scmp.ne.s32.totalorder %s41, %s44
      %p50 = scmp.eq.s32.totalorder %s17, 0
      %p51 = por %p49, %p50
      %p52 = scmp.ne.s32.totalorder %s41, %s44
      %p53 = scmp.eq.s32.totalorder %s22, 7
      %p54 = por %p52, %p53
      %p55 = scmp.ne.s32.totalorder %s44, %s45
      %p56 = scmp.eq.s32.totalorder %s22, 0
      %p57 = por %p55, %p56
      %p58 = scmp.ne.s32.totalorder %s44, %s45
      %p59 = scmp.eq.s32.totalorder %s23, 7
      %p60 = por %p58, %p59
      %p62 = scmp.ne.s32.totalorder %s45, %s61
      %p63 = scmp.eq.s32.totalorder %s23, 0
      %p64 = por %p62, %p63
      %s66 = sadd.s32 %s65, 1
      %p69 = scmp.eq.s32.totalorder %s17, 7
      %p70 = scmp.ne.s32.totalorder %s65, %s67
      %p71 = scmp.eq.s32.totalorder %s17, 0
      %p72 = por %p70, %p71
      %p73 = scmp.ne.s32.totalorder %s65, %s67
      %p74 = scmp.eq.s32.totalorder %s22, 7
      %p75 = por %p73, %p74
      %p76 = scmp.ne.s32.totalorder %s67, %s68
      %p77 = scmp.eq.s32.totalorder %s22, 0
      %p78 = por %p76, %p77
      %p79 = scmp.ne.s32.totalorder %s67, %s68
      %p80 = scmp.eq.s32.totalorder %s23, 7
      %p81 = por %p79, %p80
      %p83 = scmp.ne.s32.totalorder %s68, %s82
      %p84 = scmp.eq.s32.totalorder %s23, 0
      %p85 = por %p83, %p84
      %s87 = sadd.s32 %s86, 1
      %p90 = scmp.eq.s32.totalorder %s17, 7
      %p91 = scmp.ne.s32.totalorder %s86, %s88
      %p92 = scmp.eq.s32.totalorder %s17, 0
      %p93 = por %p91, %p92
      %p94 = scmp.ne.s32.totalorder %s86, %s88
      %p95 = scmp.eq.s32.totalorder %s22, 7
      %p96 = por %p94, %p95
      %p97 = scmp.ne.s32.totalorder %s88, %s89
      %p98 = scmp.eq.s32.totalorder %s22, 0
      %p99 = por %p97, %p98
      %p100 = scmp.ne.s32.totalorder %s88, %s89
      %p101 = scmp.eq.s32.totalorder %s23, 7
      %p102 = por %p100, %p101
      %p104 = scmp.ne.s32.totalorder %s89, %s103
      %p105 = scmp.eq.s32.totalorder %s23, 0
      %p106 = por %p104, %p105
      %s108 = sadd.s32 %s107, 1
      %p111 = scmp.eq.s32.totalorder %s17, 7
      %p112 = scmp.ne.s32.totalorder %s107, %s109
      %p113 = scmp.eq.s32.totalorder %s17, 0
      %p114 = por %p112, %p113
      %p115 = scmp.ne.s32.totalorder %s107, %s109
      %p116 = scmp.eq.s32.totalorder %s22, 7
      %p117 = por %p115, %p116
      %p118 = scmp.ne.s32.totalorder %s109, %s110
      %p119 = scmp.eq.s32.totalorder %s22, 0
      %p120 = por %p118, %p119
      %p121 = scmp.ne.s32.totalorder %s109, %s110
      %p122 = scmp.eq.s32.totalorder %s23, 7
      %p123 = por %p121, %p122
      %p125 = scmp.ne.s32.totalorder %s110, %s124
      %p126 = scmp.eq.s32.totalorder %s23, 0
      %p127 = por %p125, %p126
      %s128 = ssub.s32 %s24, %s36
      %s129 = ssub.s32 %s25, %s32
      %s130 = sor.u32 %s128, %s129
      %p131 = scmp.eq.s32.totalorder %s130, 0
      %s133 = sadd.s32 %s132, 1
      %s134 = scalar_select %p131, %s132, %s133
      %p137 = pneg %p131
      %p138 = scmp.eq.s32.totalorder %s17, 7
      %p139 = por %p137, %p138
      %p140 = scmp.ne.s32.totalorder %s132, %s135
      %p141 = scmp.eq.s32.totalorder %s17, 0
      %p142 = por %p140, %p141
      %p143 = scmp.ne.s32.totalorder %s132, %s135
      %p144 = scmp.eq.s32.totalorder %s22, 7
      %p145 = por %p143, %p144
      %p146 = scmp.ne.s32.totalorder %s135, %s136
      %p147 = scmp.eq.s32.totalorder %s22, 0
      %p148 = por %p146, %p147
      %p149 = scmp.ne.s32.totalorder %s135, %s136
      %p150 = scmp.eq.s32.totalorder %s23, 7
      %p151 = por %p149, %p150
      %p153 = scmp.ne.s32.totalorder %s136, %s152
      %p154 = scmp.eq.s32.totalorder %s23, 0
      %p155 = por %p153, %p154
      %p156 = scmp.le.s32.totalorder 1, %s17
      %p157 = scmp.lt.s32.totalorder %s17, 9
      %p158 = pnand %p156, %p157
      %p159 = pneg %p158
      // Predicated region
      $region9: #{tpu_custom_call.1} parent=5 // pred_check
        _
      $region10: #{tpu_custom_call.1} parent=5 // pred_check_branch
        %161 = sbr.rel (%p158) target = $region12
      $region11: #{tpu_custom_call.1} parent=5 // pred_region
        %s162 = ssub.s32 %s17, 1
        // Predicated region
        $region13: #{tpu_custom_call.1} parent=11 // pred_check
          %p163 = pneg %p78
        $region14: #{tpu_custom_call.1} parent=11 // pred_check_branch
          %165 = sbr.rel (%p163) target = $region16
        $region15: #{tpu_custom_call.1} parent=11 // pred_region
          %167 = vsyncadd [#allocation6], 0
          %s168 = sshll.u32 %s1, 4
          %s169 = int_to_ptr.hbm [resolvable:$true] %s168
          %s170 = sshll.u32 [#allocation5], 4
          %s171 = int_to_ptr.vmem [resolvable:$true] %s170
          %176 = dma.hbm_to_vmem [thread:$0]  %s169, 2048, %s171, [#allocation6], 128, 128, 8
        $region16: #{tpu_custom_call.1} parent=11 // pred_fallthru
          _
        // Predicated region
        $region17: #{tpu_custom_call.1} parent=11 // pred_check
          %p177 = pneg %p99
        $region18: #{tpu_custom_call.1} parent=11 // pred_check_branch
          %179 = sbr.rel (%p177) target = $region20
        $region19: #{tpu_custom_call.1} parent=11 // pred_region
          _
        $region20: #{tpu_custom_call.1} parent=11 // pred_fallthru
          _
        // Predicated region
        $region21: #{tpu_custom_call.1} parent=11 // pred_check
          %p180 = pneg %p120
        $region22: #{tpu_custom_call.1} parent=11 // pred_check_branch
          %182 = sbr.rel (%p180) target = $region24
        $region23: #{tpu_custom_call.1} parent=11 // pred_region
          _
        $region24: #{tpu_custom_call.1} parent=11 // pred_fallthru
          _
      $region12: #{tpu_custom_call.1} parent=5 // pred_fallthru
        _
      %p183 = scmp.lt.s32.totalorder %s17, 8
      // Predicated region
      $region25: #{tpu_custom_call.1} parent=5 // pred_check
        %p184 = pneg %p183
      $region26: #{tpu_custom_call.1} parent=5 // pred_check_branch
        %186 = sbr.rel (%p184) target = $region28
      $region27: #{tpu_custom_call.1} parent=5 // pred_region
        // Predicated region
        $region29: #{tpu_custom_call.1} parent=27 // pred_check
          %p187 = pneg %p51
        $region30: #{tpu_custom_call.1} parent=27 // pred_check_branch
          %189 = sbr.rel (%p187) target = $region32
        $region31: #{tpu_custom_call.1} parent=27 // pred_region
          %s190 = sand.u32 %s41, 1
          %s191 = scalar_lea.sflag [#allocation3], %s190
          %s192 = sand.u32 %s41, 1
          %s193 = smul.addr %s192, 64
          %s194 = scalar_lea.vmem [#allocation2], %s193
          %196 = vsyncadd %s191, 0
          %s197 = smul.addr %s25, 8
          %s198 = smul.addr %s24, 32
          %s199 = sadd.s32 %s197, %s198
          %s200 = smul.addr %s199, 8
          %s201 = scalar_lea.hbm %s0, %s200
          %s202 = sshll.u32 %s201, 4
          %s203 = int_to_ptr.hbm [resolvable:$true] %s202
          %s204 = sshll.u32 %s194, 4
          %s205 = int_to_ptr.vmem [resolvable:$true] %s204
          %210 = dma.hbm_to_vmem [thread:$0]  %s203, 1024, %s205, %s191, 128, 128, 8
        $region32: #{tpu_custom_call.1} parent=27 // pred_fallthru
          _
      $region28: #{tpu_custom_call.1} parent=5 // pred_fallthru
        _
      %p211 = scmp.le.s32.totalorder 1, %s17
      %p212 = scmp.lt.s32.totalorder %s17, 9
      %p213 = pnand %p211, %p212
      %p214 = pneg %p213
      // Predicated region
      $region33: #{tpu_custom_call.1} parent=5 // pred_check
        _
      $region34: #{tpu_custom_call.1} parent=5 // pred_check_branch
        %216 = sbr.rel (%p213) target = $region36
      $region35: #{tpu_custom_call.1} parent=5 // pred_region
        %s217 = ssub.s32 %s17, 1
        %s218 = sand.u32 %s44, 1
        %s219 = scalar_lea.sflag [#allocation3], %s218
        %s220 = sand.u32 %s44, 1
        %s221 = smul.addr %s220, 64
        %s222 = scalar_lea.vmem [#allocation2], %s221
        // Predicated region
        $region37: #{tpu_custom_call.1} parent=35 // pred_check
          %p223 = pneg %p57
        $region38: #{tpu_custom_call.1} parent=35 // pred_check_branch
          %225 = sbr.rel (%p223) target = $region40
        $region39: #{tpu_custom_call.1} parent=35 // pred_region
          %227 = dma.done %s219, 1024
        $region40: #{tpu_custom_call.1} parent=35 // pred_fallthru
          _
        // Predicated region
        $region41: #{tpu_custom_call.1} parent=35 // pred_check
          %p228 = pneg %p78
        $region42: #{tpu_custom_call.1} parent=35 // pred_check_branch
          %230 = sbr.rel (%p228) target = $region44
        $region43: #{tpu_custom_call.1} parent=35 // pred_region
          %232 = dma.done [#allocation6], 2048
        $region44: #{tpu_custom_call.1} parent=35 // pred_fallthru
          _
        %s233 = sand.u32 %s44, 1
        %s234 = scalar_lea.sflag [#allocation3], %s233
        %s235 = sand.u32 %s44, 1
        %s236 = smul.addr %s235, 64
        %s237 = scalar_lea.vmem [#allocation2], %s236
        %p238 = pneg %p57
        %p239 = pneg %p54
        %p240 = pneg %p78
        %p241 = pneg %p75
        %p242 = pneg %p99
        %p243 = pneg %p96
        %p244 = pneg %p120
        %p245 = pneg %p117
        %p246 = pneg %p148
        %p247 = pneg %p145
        %s248 = sand.u32 %s135, 1
        %s249 = scalar_lea.sflag [#allocation4], %s248
        %s250 = sand.u32 %s135, 1
        %s251 = smul.addr %s250, 160
        %s252 = scalar_lea.vmem [#allocation7], %s251
        %v253 = vld [vmem:[%s222] sm:$0xff]
        %v254 = vld [vmem:[%s222 + $0x8] sm:$0xff]
        %v255 = vld [vmem:[%s222 + $0x10] sm:$0xff]
        %v256 = vld [vmem:[%s222 + $0x18] sm:$0xff]
        %v257 = vld [vmem:[%s222 + $0x20] sm:$0xff]
        %v258 = vld [vmem:[%s222 + $0x28] sm:$0xff]
        %v259 = vld [vmem:[%s222 + $0x30] sm:$0xff]
        %v260 = vld [vmem:[%s222 + $0x38] sm:$0xff]
        %v261 = vld [vmem:[#allocation5] sm:$0xff]
        %v262 = vld [vmem:[#allocation5 + $0x8] sm:$0xff]
        %v263 = vld [vmem:[#allocation5 + $0x10] sm:$0xff]
        %v264 = vld [vmem:[#allocation5 + $0x18] sm:$0xff]
        %v265 = vld [vmem:[#allocation5 + $0x20] sm:$0xff]
        %v266 = vld [vmem:[#allocation5 + $0x28] sm:$0xff]
        %v267 = vld [vmem:[#allocation5 + $0x30] sm:$0xff]
        %v268 = vld [vmem:[#allocation5 + $0x38] sm:$0xff]
        %v269 = vld [vmem:[#allocation5 + $0x40] sm:$0xff]
        %v270 = vld [vmem:[#allocation5 + $0x48] sm:$0xff]
        %v271 = vld [vmem:[#allocation5 + $0x50] sm:$0xff]
        %v272 = vld [vmem:[#allocation5 + $0x58] sm:$0xff]
        %v273 = vld [vmem:[#allocation5 + $0x60] sm:$0xff]
        %v274 = vld [vmem:[#allocation5 + $0x68] sm:$0xff]
        %v275 = vld [vmem:[#allocation5 + $0x70] sm:$0xff]
        %v276 = vld [vmem:[#allocation5 + $0x78] sm:$0xff]
        %277 = vmatpush.msra.mxu0 %v276
        %278 = vmatpush.msra.mxu0 %v275
        %279 = vmatpush.msra.mxu0 %v274
        %280 = vmatpush.msra.mxu0 %v273
        %281 = vmatpush.msra.mxu0 %v272
        %282 = vmatpush.msra.mxu0 %v271
        %283 = vmatpush.msra.mxu0 %v270
        %284 = vmatpush.msra.mxu0 %v269
        %285 = vmatpush.msra.mxu0 %v268
        %286 = vmatpush.msra.mxu0 %v267
        %287 = vmatpush.msra.mxu0 %v266
        %288 = vmatpush.msra.mxu0 %v265
        %289 = vmatpush.msra.mxu0 %v264
        %290 = vmatpush.msra.mxu0 %v263
        %291 = vmatpush.msra.mxu0 %v262
        %292 = vmatpush.msra.mxu0 %v261
        %293 = vmatmul.f32.gmra.mxu0 %v253
        %v294 = vpop.f32.mrf.mxu0
        %v295 = vadd.f32 0.0, %v294
        %296 = vmatmul.f32.gmra.mxu0 %v254
        %v297 = vpop.f32.mrf.mxu0
        %v298 = vadd.f32 0.0, %v297
        %299 = vmatmul.f32.gmra.mxu0 %v255
        %v300 = vpop.f32.mrf.mxu0
        %v301 = vadd.f32 0.0, %v300
        %302 = vmatmul.f32.gmra.mxu0 %v256
        %v303 = vpop.f32.mrf.mxu0
        %v304 = vadd.f32 0.0, %v303
        %305 = vmatmul.f32.gmra.mxu0 %v257
        %v306 = vpop.f32.mrf.mxu0
        %v307 = vadd.f32 0.0, %v306
        %308 = vmatmul.f32.gmra.mxu0 %v258
        %v309 = vpop.f32.mrf.mxu0
        %v310 = vadd.f32 0.0, %v309
        %311 = vmatmul.f32.gmra.mxu0 %v259
        %v312 = vpop.f32.mrf.mxu0
        %v313 = vadd.f32 0.0, %v312
        %314 = vmatmul.f32.gmra.mxu0 %v260
        %v315 = vpop.f32.mrf.mxu0
        %v316 = vadd.f32 0.0, %v315
        %317 = vdwg.mxu0
        %v318 = vld [vmem:[%s2] sm:$0x1]
        %v320 = vperm.slane %v318, 0
        %v322 = vmul.f32 %v295, %v320
        %v323 = vmul.f32 %v298, %v320
        %v324 = vmul.f32 %v301, %v320
        %v325 = vmul.f32 %v304, %v320
        %v326 = vmul.f32 %v307, %v320
        %v327 = vmul.f32 %v310, %v320
        %v328 = vmul.f32 %v313, %v320
        %v329 = vmul.f32 %v316, %v320
        %v330 = vld [vmem:[%s3] sm:$0x1]
        %v332 = vperm.slane %v330, 0
        %v334 = vadd.f32 %v322, %v332
        %v335 = vadd.f32 %v323, %v332
        %v336 = vadd.f32 %v324, %v332
        %v337 = vadd.f32 %v325, %v332
        %v338 = vadd.f32 %v326, %v332
        %v339 = vadd.f32 %v327, %v332
        %v340 = vadd.f32 %v328, %v332
        %v341 = vadd.f32 %v329, %v332
        %v342 = vmax.f32 %v334, 0.0
        %v343 = vmax.f32 %v335, 0.0
        %v344 = vmax.f32 %v336, 0.0
        %v345 = vmax.f32 %v337, 0.0
        %v346 = vmax.f32 %v338, 0.0
        %v347 = vmax.f32 %v339, 0.0
        %v348 = vmax.f32 %v340, 0.0
        %v349 = vmax.f32 %v341, 0.0
        %350 = vst [vmem:[%s252] sm:$0xff] 0.0
        %351 = vst [vmem:[%s252 + $0x8] sm:$0xff] 0.0
        %352 = vst [vmem:[%s252 + $0x10] sm:$0xff] 0.0
        %353 = vst [vmem:[%s252 + $0x18] sm:$0xff] 0.0
        %354 = vst [vmem:[%s252 + $0x20] sm:$0xff] 0.0
        %355 = vst [vmem:[%s252 + $0x28] sm:$0xff] 0.0
        %356 = vst [vmem:[%s252 + $0x30] sm:$0xff] 0.0
        %357 = vst [vmem:[%s252 + $0x38] sm:$0xff] 0.0
        %358 = vst [vmem:[%s252 + $0x40] sm:$0xff] 0.0
        %359 = vst [vmem:[%s252 + $0x48] sm:$0xff] 0.0
        %360 = vst [vmem:[%s252 + $0x50] sm:$0xff] 0.0
        %361 = vst [vmem:[%s252 + $0x58] sm:$0xff] 0.0
        %362 = vst [vmem:[%s252 + $0x60] sm:$0xff] 0.0
        %363 = vst [vmem:[%s252 + $0x68] sm:$0xff] 0.0
        %364 = vst [vmem:[%s252 + $0x70] sm:$0xff] 0.0
        %365 = vst [vmem:[%s252 + $0x78] sm:$0xff] 0.0
        %366 = vst [vmem:[%s252 + $0x80] sm:$0xff] 0.0
        %367 = vst [vmem:[%s252 + $0x88] sm:$0xff] 0.0
        %368 = vst [vmem:[%s252 + $0x90] sm:$0xff] 0.0
        %369 = vst [vmem:[%s252 + $0x98] sm:$0xff] 0.0
        %s370 = scalar_lea.vmem %s252, 16 [#allocation7]
        %371 = vst [vmem:[%s370 + $0x1] sm:$0xff] %v342
        %372 = vst [vmem:[%s370 + $0x11] sm:$0xff] %v343
        %373 = vst [vmem:[%s370 + $0x21] sm:$0xff] %v344
        %374 = vst [vmem:[%s370 + $0x31] sm:$0xff] %v345
        %375 = vst [vmem:[%s370 + $0x41] sm:$0xff] %v346
        %376 = vst [vmem:[%s370 + $0x51] sm:$0xff] %v347
        %377 = vst [vmem:[%s370 + $0x61] sm:$0xff] %v348
        %378 = vst [vmem:[%s370 + $0x71] sm:$0xff] %v349
        %s379 = sand.u32 %s135, 1
        %s380 = scalar_lea.sflag [#allocation4], %s379
        %s381 = sand.u32 %s135, 1
        %s382 = smul.addr %s381, 160
        %s383 = scalar_lea.vmem [#allocation7], %s382
        // Predicated region
        $region45: #{tpu_custom_call.1} parent=35 // pred_check
          %p384 = pneg %p145
        $region46: #{tpu_custom_call.1} parent=35 // pred_check_branch
          %386 = sbr.rel (%p384) target = $region48
        $region47: #{tpu_custom_call.1} parent=35 // pred_region
          %388 = vsyncadd %s380, 0
          %s389 = smul.addr %s27, 20
          %s390 = smul.addr %s26, 80
          %s391 = sadd.s32 %s389, %s390
          %s392 = smul.addr %s391, 8
          %s393 = scalar_lea.hbm %s4, %s392
          %s394 = sshll.u32 %s383, 4
          %s395 = int_to_ptr.vmem [resolvable:$true] %s394
          %s396 = sshll.u32 %s393, 4
          %s397 = int_to_ptr.hbm [resolvable:$true] %s396
          %402 = dma.vmem_to_hbm [thread:$0]  %s395, 2560, %s397, %s380, 128, 128, 8
        $region48: #{tpu_custom_call.1} parent=35 // pred_fallthru
          _
      $region36: #{tpu_custom_call.1} parent=5 // pred_fallthru
        _
      %p403 = scmp.le.s32.totalorder 2, %s17
      // Predicated region
      $region49: #{tpu_custom_call.1} parent=5 // pred_check
        %p404 = pneg %p403
      $region50: #{tpu_custom_call.1} parent=5 // pred_check_branch
        %406 = sbr.rel (%p404) target = $region52
      $region51: #{tpu_custom_call.1} parent=5 // pred_region
        %s407 = ssub.s32 %s17, 2
        // Predicated region
        $region53: #{tpu_custom_call.1} parent=51 // pred_check
          %p408 = pneg %p151
        $region54: #{tpu_custom_call.1} parent=51 // pred_check_branch
          %410 = sbr.rel (%p408) target = $region56
        $region55: #{tpu_custom_call.1} parent=51 // pred_region
          %s411 = sand.u32 %s136, 1
          %s412 = scalar_lea.sflag [#allocation4], %s411
          %s413 = sand.u32 %s136, 1
          %s414 = smul.addr %s413, 160
          %s415 = scalar_lea.vmem [#allocation7], %s414
          %417 = dma.done %s412, 2560
        $region56: #{tpu_custom_call.1} parent=51 // pred_fallthru
          _
      $region52: #{tpu_custom_call.1} parent=5 // pred_fallthru
        _
    $region6: #{tpu_custom_call.1} parent=1 // loop_footer
      %s21 = sadd.s32 1, %s17
    $region7: #{tpu_custom_call.1} parent=1 // loop_footer_branch
      %16 = sbr.rel target = $region3
    $region8: #{tpu_custom_call.1} parent=1 // loop_exit
      _
    %418 = vsyncpa [#allocation3], 1
    %s419 = scalar_lea.sflag [#allocation3], 1
    %420 = vsyncpa %s419, 1
    %421 = vsyncpa [#allocation6], 1
    %422 = vsyncpa [#allocation4], 1
    %s423 = scalar_lea.sflag [#allocation4], 1
    %424 = vsyncpa %s423, 1

</llo_original>
